<compile_context>
chip_gen: v5e
topology: v5e:2x2
jax: 0.10.0
libtpu: 0.0.40
codegen_flags: <defaults>
</compile_context>

<pallas_src>
import functools

import jax
import jax.numpy as jnp
from jax import lax
from jax.experimental import pallas as pl
from jax.experimental.pallas import tpu as pltpu

_LANES = 128          # lane-dense last dim (full vreg width)
_ACC_ROWS = 32        # accumulator block rows -> 4 independent VPU add chains
_ROW_ALIGN = 32       # keeps bf16 (16,128) / int8 (32,128) packed tiles aligned
_MAX_TILE_ROWS = 4096  # 4096 * 128 * 4B = 2 MiB per f32 input block


def _cdiv(a, b):
    return -(-a // b)


def _round_up(a, m):
    return _cdiv(a, m) * m


# ----------------------------- per-generation config -----------------------------
@functools.lru_cache(maxsize=1)
def _chip_config():
    """Returns (num_core_splits, vmem_limit_bytes, input_buffer_depth)."""
    kind = ""
    try:
        kind = jax.devices()[0].device_kind.lower()
    except Exception:
        pass
    vmem_phys = None
    try:
        info = pltpu.get_tpu_info()
        v = getattr(info, "vmem_capacity_bytes", None)
        if isinstance(v, int) and v > 0:
            vmem_phys = v
    except Exception:
        pass
    is_v7 = ("v7" in kind) or (vmem_phys is not None and vmem_phys <= (96 << 20))
    if is_v7:
        # v7x: 2 TensorCores / chip, only 64 MiB physical VMEM -> conscious limit,
        # deeper input buffering (short DMAs at 3.2 TB/s).
        return 2, 40 << 20, 3
    if vmem_phys is not None or any(t in kind for t in ("v4", "v5", "v6")):
        # v5e / v6e: 1 TC, 128 MiB physical VMEM; raise the scoped limit past
        # v5e's 16 MiB default so the 2 MiB blocks double-buffer comfortably.
        return 1, 64 << 20, 2
    # Unknown backend: conservative, safe-everywhere settings.
    return 1, 32 << 20, 2


def _input_spec(block_shape, index_map, buffers):
    """BlockSpec with optional deeper pipelining (only requested on v7x)."""
    if buffers > 2:
        try:
            return pl.BlockSpec(block_shape, index_map, pipeline_mode=pl.Buffered(buffers))
        except Exception:
            pass
    return pl.BlockSpec(block_shape, index_map)


# --------------------------------- kernel bodies ---------------------------------
def _make_heatmap_kernel_flat(*, tile, tiles_per_split, valid_rows):
    def kernel(pred_ref, gt_ref, mask_ref, out_ref):
        c = pl.program_id(0)
        t = pl.program_id(1)

        @pl.when(t == 0)
        def _():
            out_ref[...] = jnp.zeros_like(out_ref)

        # In-kernel tail mask (replaces host-side zero padding).
        row0 = (c * tiles_per_split + t) * tile
        r = lax.broadcasted_iota(jnp.int32, (tile, 1), 0)
        valid = (row0 + r) < valid_rows

        d = pred_ref[...].astype(jnp.float32) - gt_ref[...].astype(jnp.float32)
        contrib = jnp.where(valid, d * d * mask_ref[...].astype(jnp.float32), 0.0)
        # (tile,128) -> (tile/32, 32, 128): 4 independent per-vreg add chains.
        out_ref[...] += contrib.reshape(-1, _ACC_ROWS, _LANES).sum(axis=0)

    return kernel


def _make_heatmap_kernel_cshared(*, tile, valid_rows):
    """Mask is channel-shared: its BlockSpec index_map drops the C grid axis."""
    def kernel(pred_ref, gt_ref, mask_ref, out_ref):
        c = pl.program_id(1)
        t = pl.program_id(2)

        @pl.when(jnp.logical_and(c == 0, t == 0))
        def _():
            out_ref[...] = jnp.zeros_like(out_ref)

        row0 = t * tile
        r = lax.broadcasted_iota(jnp.int32, (tile, 1), 0)
        valid = (row0 + r) < valid_rows

        pred = pred_ref[0, 0].astype(jnp.float32)
        gt = gt_ref[0, 0].astype(jnp.float32)
        m = mask_ref[0, 0].astype(jnp.float32)
        d = pred - gt
        contrib = jnp.where(valid, d * d * m, 0.0)
        out_ref[...] += contrib.reshape(-1, _ACC_ROWS, _LANES).sum(axis=0)

    return kernel


def _make_offsets_kernel_flat(*, tile, tiles_per_split, valid_rows, beta):
    inv_2beta = 0.5 / beta
    half_beta = 0.5 * beta

    def kernel(pred_ref, gt_ref, w_ref, sum_ref, cnt_ref):
        c = pl.program_id(0)
        t = pl.program_id(1)

        @pl.when(t == 0)
        def _():
            sum_ref[...] = jnp.zeros_like(sum_ref)
            cnt_ref[...] = jnp.zeros_like(cnt_ref)

        row0 = (c * tiles_per_split + t) * tile
        r = lax.broadcasted_iota(jnp.int32, (tile, 1), 0)
        valid = (row0 + r) < valid_rows

        l1 = jnp.abs(pred_ref[...].astype(jnp.float32) - gt_ref[...].astype(jnp.float32))
        sl1 = jnp.where(l1 < beta, inv_2beta * l1 * l1, l1 - half_beta)
        w = w_ref[...].astype(jnp.float32)
        s = jnp.where(valid, sl1 * w, 0.0)
        p = jnp.where(jnp.logical_and(valid, w > 0), 1.0, 0.0)
        sum_ref[...] += s.reshape(-1, _ACC_ROWS, _LANES).sum(axis=0)
        cnt_ref[...] += p.reshape(-1, _ACC_ROWS, _LANES).sum(axis=0)

    return kernel


def _make_offsets_kernel_cshared(*, tile, valid_rows, beta):
    inv_2beta = 0.5 / beta
    half_beta = 0.5 * beta

    def kernel(pred_ref, gt_ref, w_ref, sum_ref, cnt_ref):
        c = pl.program_id(1)
        t = pl.program_id(2)

        @pl.when(jnp.logical_and(c == 0, t == 0))
        def _():
            sum_ref[...] = jnp.zeros_like(sum_ref)
            cnt_ref[...] = jnp.zeros_like(cnt_ref)

        row0 = t * tile
        r = lax.broadcasted_iota(jnp.int32, (tile, 1), 0)
        valid = (row0 + r) < valid_rows

        pred = pred_ref[0, 0].astype(jnp.float32)
        gt = gt_ref[0, 0].astype(jnp.float32)
        w = w_ref[0, 0].astype(jnp.float32)
        l1 = jnp.abs(pred - gt)
        sl1 = jnp.where(l1 < beta, inv_2beta * l1 * l1, l1 - half_beta)
        s = jnp.where(valid, sl1 * w, 0.0)
        # Count positives only once per (n, hw) position: matches PyTorch's
        # torch.nonzero(weights > 0) on the *un-broadcast* weights.
        p = jnp.where(jnp.logical_and(jnp.logical_and(valid, w > 0), c == 0), 1.0, 0.0)
        sum_ref[...] += s.reshape(-1, _ACC_ROWS, _LANES).sum(axis=0)
        cnt_ref[...] += p.reshape(-1, _ACC_ROWS, _LANES).sum(axis=0)

    return kernel


# --------------------------------- reduction drivers ---------------------------------
def _normalize_outputs(res):
    if not isinstance(res, (tuple, list)):
        res = (res,)
    return tuple(res)


def _partial_sums_flat(kernel_factory, arrays, num_outputs, flops_per_elem):
    """Lane-dense flat reduction over same-shaped arrays.  Returns per-split
    (ACC_ROWS, 128) partial-sum blocks; final scalar math is done by the caller."""
    splits_cfg, vmem_limit, buffers = _chip_config()

    size = int(arrays[0].size)
    rem = size % _LANES
    arrs2d = []
    for a in arrays:
        flat = a.reshape(-1)                     # row-major reshape == bitcast
        if rem:
            # TODO(synk): only hit when numel % 128 != 0 (never for DEKR maps); a
            # sub-128-element pad still costs XLA one copy of the tensor.
            flat = jnp.pad(flat, (0, _LANES - rem))
        arrs2d.append(flat.reshape(-1, _LANES))  # bitcast, no HBM copy
    rows = arrs2d[0].shape[0]

    splits = splits_cfg if rows >= 2 * _ROW_ALIGN else 1
    tile = min(_MAX_TILE_ROWS, _round_up(_cdiv(rows, splits), _ROW_ALIGN))
    total_tiles = _cdiv(rows, tile)
    tiles_per_split = _cdiv(total_tiles, splits)
    use_buffers = buffers if tiles_per_split >= buffers else 2

    def in_idx(c, t):
        # Clamp so an over-hanging grid step never issues an out-of-range DMA;
        # its contribution is zeroed by the in-kernel row mask.
        return (jnp.minimum(c * tiles_per_split + t, total_tiles - 1), 0)

    in_spec = _input_spec((tile, _LANES), in_idx, use_buffers)
    out_spec = pl.BlockSpec((_ACC_ROWS, _LANES), lambda c, t: (c, 0))
    out_shape = jax.ShapeDtypeStruct((splits * _ACC_ROWS, _LANES), jnp.float32)

    kernel = kernel_factory(tile=tile, tiles_per_split=tiles_per_split, valid_rows=rows)

    bytes_accessed = sum(int(a.size) * a.dtype.itemsize for a in arrays) \
        + num_outputs * splits * _ACC_ROWS * _LANES * 4
    cost = pl.CostEstimate(flops=int(flops_per_elem * size), transcendentals=0,
                           bytes_accessed=int(bytes_accessed))

    if splits > 1:
        sem = (getattr(pltpu, "CORE_PARALLEL", "parallel"), pltpu.ARBITRARY)
    else:
        sem = ("arbitrary", "arbitrary")

    res = pl.pallas_call(
        kernel,
        out_shape=tuple(out_shape for _ in range(num_outputs)),
        grid=(splits, tiles_per_split),
        in_specs=[in_spec] * len(arrays),
        out_specs=tuple(out_spec for _ in range(num_outputs)),
        compiler_params=pltpu.CompilerParams(
            dimension_semantics=sem, vmem_limit_bytes=vmem_limit),
        cost_estimate=cost,
    )(*arrs2d)
    return _normalize_outputs(res)


def _partial_sums_cshared(kernel_factory, big_arrays, shared_array, num_outputs,
                          flops_per_elem):
    """Reduction where `shared_array` (mask/weights) is shared across the channel
    axis: grid (N, C, hw-tiles) and the shared array's index_map drops C, so the
    broadcast is never materialized in HBM."""
    _, vmem_limit, buffers = _chip_config()

    n, c_dim = big_arrays[0].shape[:2]
    hw = int(big_arrays[0].size) // (n * c_dim)
    hw_rows = hw // _LANES

    big3 = [a.reshape(n, c_dim, hw_rows, _LANES) for a in big_arrays]     # bitcast
    shared3 = shared_array.reshape(n, 1, hw_rows, _LANES)                  # bitcast

    tile = min(_MAX_TILE_ROWS, _round_up(hw_rows, _ROW_ALIGN))
    hw_tiles = _cdiv(hw_rows, tile)
    use_buffers = buffers if (c_dim * hw_tiles) >= buffers else 2

    big_spec = _input_spec((1, 1, tile, _LANES), lambda i, j, t: (i, j, t, 0), use_buffers)
    shr_spec = _input_spec((1, 1, tile, _LANES), lambda i, j, t: (i, 0, t, 0), use_buffers)
    out_spec = pl.BlockSpec((_ACC_ROWS, _LANES), lambda i, j, t: (i, 0))
    out_shape = jax.ShapeDtypeStruct((n * _ACC_ROWS, _LANES), jnp.float32)

    kernel = kernel_factory(tile=tile, valid_rows=hw_rows)

    size = int(big_arrays[0].size)
    bytes_accessed = sum(int(a.size) * a.dtype.itemsize for a in big_arrays) \
        + int(shared_array.size) * shared_array.dtype.itemsize \
        + num_outputs * n * _ACC_ROWS * _LANES * 4
    cost = pl.CostEstimate(flops=int(flops_per_elem * size), transcendentals=0,
                           bytes_accessed=int(bytes_accessed))

    res = pl.pallas_call(
        kernel,
        out_shape=tuple(out_shape for _ in range(num_outputs)),
        grid=(n, c_dim, hw_tiles),
        in_specs=[big_spec] * len(big_arrays) + [shr_spec],
        out_specs=tuple(out_spec for _ in range(num_outputs)),
        compiler_params=pltpu.CompilerParams(
            dimension_semantics=("parallel", "arbitrary", "arbitrary"),
            vmem_limit_bytes=vmem_limit),
        cost_estimate=cost,
    )(*big3, shared3)
    return _normalize_outputs(res)


def _channel_shared(aux_shape, full_shape):
    if len(full_shape) != 4:
        return False
    n, _, h, w = full_shape
    return tuple(aux_shape) in ((n, 1, h, w), (n, h, w)) and (h * w) % _LANES == 0


def _heatmap_partials(pred, gt, mask):
    if tuple(mask.shape) == tuple(pred.shape):
        (p,) = _partial_sums_flat(_make_heatmap_kernel_flat, (pred, gt, mask), 1, 5)
    elif _channel_shared(mask.shape, pred.shape):
        (p,) = _partial_sums_cshared(_make_heatmap_kernel_cshared, (pred, gt), mask, 1, 5)
    else:
        # TODO(synk): arbitrary broadcast patterns still materialize the mask.
        mask = jnp.broadcast_to(mask, pred.shape)
        (p,) = _partial_sums_flat(_make_heatmap_kernel_flat, (pred, gt, mask), 1, 5)
    return p


def _offsets_partials(pred, gt, w, beta):
    flat_factory = functools.partial(_make_offsets_kernel_flat, beta=beta)
    if tuple(w.shape) == tuple(pred.shape):
        s, c = _partial_sums_flat(flat_factory, (pred, gt, w), 2, 10)
        count_scale = 1.0
    elif _channel_shared(w.shape, pred.shape):
        s, c = _partial_sums_cshared(
            functools.partial(_make_offsets_kernel_cshared, beta=beta), (pred, gt), w, 2, 10)
        count_scale = 1.0
    else:
        # TODO(synk): arbitrary broadcast patterns still materialize the weights.
        wb = jnp.broadcast_to(w, pred.shape)
        s, c = _partial_sums_flat(flat_factory, (pred, gt, wb), 2, 10)
        count_scale = float(w.size) / float(pred.size)   # undo broadcast in the count
    return s, c, count_scale


# ------------------------------------ module wrapper ------------------------------------
class MultiLossFactory:
    """JAX/Pallas port of lib/core/loss_main.py::MultiLossFactory forward."""

    def __init__(self, cfg):
        self.num_joints = cfg["MODEL"]["NUM_JOINTS"]
        self.bg_weight = cfg["DATASET"]["BG_WEIGHT"]          # unused in forward (parity)
        self.with_heatmap_loss = cfg["LOSS"]["WITH_HEATMAPS_LOSS"]
        self.heatmap_loss_factor = float(cfg["LOSS"]["HEATMAPS_LOSS_FACTOR"])
        self.with_offset_loss = cfg["LOSS"]["WITH_OFFSETS_LOSS"]
        self.offset_loss_factor = float(cfg["LOSS"]["OFFSETS_LOSS_FACTOR"])
        self._forward = jax.jit(self._forward_impl)

    def _forward_impl(self, output, poffset, heatmap, mask, offset, offset_w):
        heatmap_loss = None
        offset_loss = None

        if self.with_heatmap_loss:
            assert output.shape == heatmap.shape
            partials = _heatmap_partials(output, heatmap, mask)
            # Sequential per-dim means in the PyTorch module compose to a full mean.
            heatmap_loss = (jnp.sum(partials) / float(output.size)) \
                * self.heatmap_loss_factor

        if self.with_offset_loss:
            assert poffset.shape == offset.shape
            sums, cnts, count_scale = _offsets_partials(poffset, offset, offset_w,
                                                        beta=1.0 / 9.0)
            num_pos = jnp.maximum(jnp.sum(cnts) * count_scale, 1.0)  # torch: 0 -> 1.0
            offset_loss = (jnp.sum(sums) / num_pos) * self.offset_loss_factor

        return heatmap_loss, offset_loss

    def __call__(self, output, poffset, heatmap, mask, offset, offset_w):
        return self._forward(output, poffset, heatmap, mask, offset, offset_w)


# ------------------------------------------ main ------------------------------------------
if __name__ == "__main__":
    cfg = {
        "MODEL": {"NUM_JOINTS": 4},
        "DATASET": {"BG_WEIGHT": 0.1},
        "LOSS": {
            "WITH_HEATMAPS_LOSS": True,
            "HEATMAPS_LOSS_FACTOR": 1.0,
            "WITH_OFFSETS_LOSS": True,
            "OFFSETS_LOSS_FACTOR": 0.03,
        },
    }

    N, K, H, W = 2, cfg["MODEL"]["NUM_JOINTS"], 16, 16
    C_hm = K + 1          # joints + center heatmap (DEKR convention)
    C_off = 2 * K         # (x, y) offsets per joint

    key = jax.random.PRNGKey(0)
    k = jax.random.split(key, 8)
    output = jax.random.normal(k[0], (N, C_hm, H, W), dtype=jnp.float32)
    heatmap = jax.random.uniform(k[1], (N, C_hm, H, W), dtype=jnp.float32)
    mask = (jax.random.uniform(k[2], (N, C_hm, H, W)) > 0.2).astype(jnp.float32)
    poffset = jax.random.normal(k[3], (N, C_off, H, W), dtype=jnp.float32)
    offset = jax.random.normal(k[4], (N, C_off, H, W), dtype=jnp.float32)
    offset_w = jnp.where(jax.random.uniform(k[5], (N, C_off, H, W)) > 0.7,
                         jax.random.uniform(k[5], (N, C_off, H, W)), 0.0)
    mask_shared = (jax.random.uniform(k[6], (N, 1, H, W)) > 0.2).astype(jnp.float32)
    offset_w_shared = jnp.where(jax.random.uniform(k[7], (N, 1, H, W)) > 0.6,
                                jax.random.uniform(k[7], (N, 1, H, W)), 0.0)

    loss_factory = MultiLossFactory(cfg)

    # ---- full-shape mask / weights (flat lane-dense path) ----
    hm_loss, off_loss = loss_factory(output, poffset, heatmap, mask, offset, offset_w)
    jax.block_until_ready((hm_loss, off_loss))

    beta = 1.0 / 9.0
    hm_ref = jnp.mean((output - heatmap) ** 2 * mask) * cfg["LOSS"]["HEATMAPS_LOSS_FACTOR"]
    l1 = jnp.abs(poffset - offset)
    sl1 = jnp.where(l1 < beta, 0.5 * l1 ** 2 / beta, l1 - 0.5 * beta)
    num_pos = jnp.maximum(jnp.sum(offset_w > 0).astype(jnp.float32), 1.0)
    off_ref = jnp.sum(sl1 * offset_w) / num_pos * cfg["LOSS"]["OFFSETS_LOSS_FACTOR"]
    assert jnp.allclose(hm_loss, hm_ref, rtol=1e-5, atol=1e-6), (hm_loss, hm_ref)
    assert jnp.allclose(off_loss, off_ref, rtol=1e-5, atol=1e-6), (off_loss, off_ref)

    # ---- channel-shared mask / weights (no broadcast materialization path) ----
    hm_loss2, off_loss2 = loss_factory(output, poffset, heatmap, mask_shared,
                                       offset, offset_w_shared)
    jax.block_until_ready((hm_loss2, off_loss2))

    hm_ref2 = jnp.mean((output - heatmap) ** 2 * mask_shared) \
        * cfg["LOSS"]["HEATMAPS_LOSS_FACTOR"]
    num_pos2 = jnp.maximum(jnp.sum(offset_w_shared > 0).astype(jnp.float32), 1.0)
    off_ref2 = jnp.sum(sl1 * offset_w_shared) / num_pos2 * cfg["LOSS"]["OFFSETS_LOSS_FACTOR"]
    assert jnp.allclose(hm_loss2, hm_ref2, rtol=1e-5, atol=1e-6), (hm_loss2, hm_ref2)
    assert jnp.allclose(off_loss2, off_ref2, rtol=1e-5, atol=1e-6), (off_loss2, off_ref2)

    print("KERNEL_OK")
</pallas_src>

<mosaic_0001>
module attributes {stable_mosaic.version = 11 : i64} {
  func.func @kernel(%arg0: i32, %arg1: i32, %arg2: memref<32x128xf32, #tpu.memory_space<vmem>>, %arg3: memref<32x128xf32, #tpu.memory_space<vmem>>, %arg4: memref<32x128xf32, #tpu.memory_space<vmem>>, %arg5: memref<32x128xf32, #tpu.memory_space<vmem>>, %arg6: memref<32x128xf32, #tpu.memory_space<vmem>>) attributes {dimension_semantics = [#tpu.dimension_semantics<arbitrary>, #tpu.dimension_semantics<arbitrary>], iteration_bounds = array<i64: 1, 1>, scalar_prefetch = 0 : i64, scratch_operands = 0 : i64, tpu.core_type = #tpu.core_type<tc>, window_params = [{transform_indices = @transform_0, window_bounds = array<i64: 32, 128>}, {transform_indices = @transform_1, window_bounds = array<i64: 32, 128>}, {transform_indices = @transform_2, window_bounds = array<i64: 32, 128>}, {transform_indices = @transform_3, window_bounds = array<i64: 32, 128>}, {transform_indices = @transform_4, window_bounds = array<i64: 32, 128>}]} {
    %c0_i32 = arith.constant 0 : i32
    %0 = arith.cmpi eq, %arg1, %c0_i32 : i32
    %1 = arith.extui %0 : i1 to i32
    %c0_i32_0 = arith.constant 0 : i32
    %2 = arith.cmpi ne, %1, %c0_i32_0 : i32
    scf.if %2 {
      %cst_23 = arith.constant 0.000000e+00 : f32
      %46 = vector.broadcast %cst_23 : f32 to vector<32x128xf32>
      %c0_24 = arith.constant 0 : index
      %c0_25 = arith.constant 0 : index
      %47 = vector.load %arg5[%c0_24, %c0_25] : memref<32x128xf32, #tpu.memory_space<vmem>>, vector<32x128xf32>
      tpu.vector_store %arg5[%c0_24, %c0_25], %46 {strides = array<i32>} : memref<32x128xf32, #tpu.memory_space<vmem>>, vector<32x128xf32>,
      %cst_26 = arith.constant 0.000000e+00 : f32
      %48 = vector.broadcast %cst_26 : f32 to vector<32x128xf32>
      %c0_27 = arith.constant 0 : index
      %c0_28 = arith.constant 0 : index
      %49 = vector.load %arg6[%c0_27, %c0_28] : memref<32x128xf32, #tpu.memory_space<vmem>>, vector<32x128xf32>
      tpu.vector_store %arg6[%c0_27, %c0_28], %48 {strides = array<i32>} : memref<32x128xf32, #tpu.memory_space<vmem>>, vector<32x128xf32>,
    } else {
    }
    %c1_i32 = arith.constant 1 : i32
    %3 = arith.muli %arg0, %c1_i32 : i32
    %4 = arith.addi %3, %arg1 : i32
    %c32_i32 = arith.constant 32 : i32
    %5 = arith.muli %4, %c32_i32 : i32
    %6 = tpu.iota {dimensions = array<i32: 0>} : vector<32x1xi32>
    %7 = vector.broadcast %5 : i32 to vector<32x1xi32>
    %8 = arith.addi %7, %6 : vector<32x1xi32>
    %c32_i32_1 = arith.constant 32 : i32
    %9 = vector.broadcast %c32_i32_1 : i32 to vector<32x1xi32>
    %10 = arith.cmpi slt, %8, %9 : vector<32x1xi32>
    %c0 = arith.constant 0 : index
    %c0_2 = arith.constant 0 : index
    %11 = vector.load %arg2[%c0, %c0_2] : memref<32x128xf32, #tpu.memory_space<vmem>>, vector<32x128xf32>
    %c0_3 = arith.constant 0 : index
    %c0_4 = arith.constant 0 : index
    %12 = vector.load %arg3[%c0_3, %c0_4] : memref<32x128xf32, #tpu.memory_space<vmem>>, vector<32x128xf32>
    %13 = arith.subf %11, %12 : vector<32x128xf32>
    %14 = math.absf %13 : vector<32x128xf32>
    %cst = arith.constant 0.111111112 : f32
    %15 = vector.broadcast %cst : f32 to vector<32x128xf32>
    %16 = arith.cmpf olt, %14, %15 : vector<32x128xf32>
    %cst_5 = arith.constant 4.500000e+00 : f32
    %17 = vector.broadcast %cst_5 : f32 to vector<32x128xf32>
    %18 = arith.mulf %17, %14 : vector<32x128xf32>
    %19 = arith.mulf %18, %14 : vector<32x128xf32>
    %cst_6 = arith.constant 0.055555556 : f32
    %20 = vector.broadcast %cst_6 : f32 to vector<32x128xf32>
    %21 = arith.subf %14, %20 : vector<32x128xf32>
    %22 = arith.select %16, %19, %21 : vector<32x128xi1>, vector<32x128xf32>
    %c0_7 = arith.constant 0 : index
    %c0_8 = arith.constant 0 : index
    %23 = vector.load %arg4[%c0_7, %c0_8] : memref<32x128xf32, #tpu.memory_space<vmem>>, vector<32x128xf32>
    %24 = arith.mulf %22, %23 : vector<32x128xf32>
    %cst_9 = arith.constant 0.000000e+00 : f32
    %25 = vector.shape_cast %10 : vector<32x1xi1> to vector<32x1xi1>
    %26 = vector.broadcast %25 : vector<32x1xi1> to vector<32x128xi1>
    %27 = vector.broadcast %cst_9 : f32 to vector<32x128xf32>
    %28 = arith.select %26, %24, %27 : vector<32x128xi1>, vector<32x128xf32>
    %cst_10 = arith.constant 0.000000e+00 : f32
    %29 = vector.broadcast %cst_10 : f32 to vector<32x128xf32>
    %30 = arith.cmpf ogt, %23, %29 : vector<32x128xf32>
    %31 = vector.broadcast %10 : vector<32x1xi1> to vector<32x128xi1>
    %32 = arith.andi %31, %30 : vector<32x128xi1>
    %cst_11 = arith.constant 1.000000e+00 : f32
    %cst_12 = arith.constant 0.000000e+00 : f32
    %33 = vector.broadcast %cst_11 : f32 to vector<32x128xf32>
    %34 = vector.broadcast %cst_12 : f32 to vector<32x128xf32>
    %35 = arith.select %32, %33, %34 : vector<32x128xi1>, vector<32x128xf32>
    %c0_13 = arith.constant 0 : index
    %c0_14 = arith.constant 0 : index
    %36 = vector.load %arg5[%c0_13, %c0_14] : memref<32x128xf32, #tpu.memory_space<vmem>>, vector<32x128xf32>
    %37 = vector.shape_cast %28 : vector<32x128xf32> to vector<1x32x128xf32>
    %cst_15 = arith.constant dense<0.000000e+00> : vector<32x128xf32>
    %38 = vector.multi_reduction <add>, %37, %cst_15 [0] : vector<1x32x128xf32> to vector<32x128xf32>
    %39 = arith.addf %36, %38 : vector<32x128xf32>
    %c0_16 = arith.constant 0 : index
    %c0_17 = arith.constant 0 : index
    %40 = vector.load %arg5[%c0_16, %c0_17] : memref<32x128xf32, #tpu.memory_space<vmem>>, vector<32x128xf32>
    tpu.vector_store %arg5[%c0_16, %c0_17], %39 {strides = array<i32>} : memref<32x128xf32, #tpu.memory_space<vmem>>, vector<32x128xf32>,
    %c0_18 = arith.constant 0 : index
    %c0_19 = arith.constant 0 : index
    %41 = vector.load %arg6[%c0_18, %c0_19] : memref<32x128xf32, #tpu.memory_space<vmem>>, vector<32x128xf32>
    %42 = vector.shape_cast %35 : vector<32x128xf32> to vector<1x32x128xf32>
    %cst_20 = arith.constant dense<0.000000e+00> : vector<32x128xf32>
    %43 = vector.multi_reduction <add>, %42, %cst_20 [0] : vector<1x32x128xf32> to vector<32x128xf32>
    %44 = arith.addf %41, %43 : vector<32x128xf32>
    %c0_21 = arith.constant 0 : index
    %c0_22 = arith.constant 0 : index
    %45 = vector.load %arg6[%c0_21, %c0_22] : memref<32x128xf32, #tpu.memory_space<vmem>>, vector<32x128xf32>
    tpu.vector_store %arg6[%c0_21, %c0_22], %44 {strides = array<i32>} : memref<32x128xf32, #tpu.memory_space<vmem>>, vector<32x128xf32>,
    return
  }
  func.func @transform_0(%arg0: i32, %arg1: i32) -> (i32, i32) {
    %c1_i32 = arith.constant 1 : i32
    %0 = arith.muli %arg0, %c1_i32 : i32
    %1 = arith.addi %0, %arg1 : i32
    %c0_i32 = arith.constant 0 : i32
    %2 = arith.minsi %1, %c0_i32 : i32
    %c0_i32_0 = arith.constant 0 : i32
    %c0_i32_1 = arith.constant 0 : i32
    return %2, %c0_i32_0 : i32, i32
  }
  func.func @transform_1(%arg0: i32, %arg1: i32) -> (i32, i32) {
    %c1_i32 = arith.constant 1 : i32
    %0 = arith.muli %arg0, %c1_i32 : i32
    %1 = arith.addi %0, %arg1 : i32
    %c0_i32 = arith.constant 0 : i32
    %2 = arith.minsi %1, %c0_i32 : i32
    %c0_i32_0 = arith.constant 0 : i32
    %c0_i32_1 = arith.constant 0 : i32
    return %2, %c0_i32_0 : i32, i32
  }
  func.func @transform_2(%arg0: i32, %arg1: i32) -> (i32, i32) {
    %c1_i32 = arith.constant 1 : i32
    %0 = arith.muli %arg0, %c1_i32 : i32
    %1 = arith.addi %0, %arg1 : i32
    %c0_i32 = arith.constant 0 : i32
    %2 = arith.minsi %1, %c0_i32 : i32
    %c0_i32_0 = arith.constant 0 : i32
    %c0_i32_1 = arith.constant 0 : i32
    return %2, %c0_i32_0 : i32, i32
  }
  func.func @transform_3(%arg0: i32, %arg1: i32) -> (i32, i32) {
    %c0_i32 = arith.constant 0 : i32
    %c0_i32_0 = arith.constant 0 : i32
    return %arg0, %c0_i32 : i32, i32
  }
  func.func @transform_4(%arg0: i32, %arg1: i32) -> (i32, i32) {
    %c0_i32 = arith.constant 0 : i32
    %c0_i32_0 = arith.constant 0 : i32
    return %arg0, %c0_i32 : i32, i32
  }
}

module attributes {stable_mosaic.version = 11 : i64} {
  func.func @kernel(%arg0: i32, %arg1: i32, %arg2: memref<32x128xf32, #tpu.memory_space<vmem>>, %arg3: memref<32x128xf32, #tpu.memory_space<vmem>>, %arg4: memref<32x128xf32, #tpu.memory_space<vmem>>, %arg5: memref<32x128xf32, #tpu.memory_space<vmem>>) attributes {dimension_semantics = [#tpu.dimension_semantics<arbitrary>, #tpu.dimension_semantics<arbitrary>], iteration_bounds = array<i64: 1, 1>, scalar_prefetch = 0 : i64, scratch_operands = 0 : i64, tpu.core_type = #tpu.core_type<tc>, window_params = [{transform_indices = @transform_0, window_bounds = array<i64: 32, 128>}, {transform_indices = @transform_1, window_bounds = array<i64: 32, 128>}, {transform_indices = @transform_2, window_bounds = array<i64: 32, 128>}, {transform_indices = @transform_3, window_bounds = array<i64: 32, 128>}]} {
    %c0_i32 = arith.constant 0 : i32
    %0 = arith.cmpi eq, %arg1, %c0_i32 : i32
    %1 = arith.extui %0 : i1 to i32
    %c0_i32_0 = arith.constant 0 : i32
    %2 = arith.cmpi ne, %1, %c0_i32_0 : i32
    scf.if %2 {
      %cst_11 = arith.constant 0.000000e+00 : f32
      %26 = vector.broadcast %cst_11 : f32 to vector<32x128xf32>
      %c0_12 = arith.constant 0 : index
      %c0_13 = arith.constant 0 : index
      %27 = vector.load %arg5[%c0_12, %c0_13] : memref<32x128xf32, #tpu.memory_space<vmem>>, vector<32x128xf32>
      tpu.vector_store %arg5[%c0_12, %c0_13], %26 {strides = array<i32>} : memref<32x128xf32, #tpu.memory_space<vmem>>, vector<32x128xf32>,
    } else {
    }
    %c1_i32 = arith.constant 1 : i32
    %3 = arith.muli %arg0, %c1_i32 : i32
    %4 = arith.addi %3, %arg1 : i32
    %c32_i32 = arith.constant 32 : i32
    %5 = arith.muli %4, %c32_i32 : i32
    %6 = tpu.iota {dimensions = array<i32: 0>} : vector<32x1xi32>
    %7 = vector.broadcast %5 : i32 to vector<32x1xi32>
    %8 = arith.addi %7, %6 : vector<32x1xi32>
    %c20_i32 = arith.constant 20 : i32
    %9 = vector.broadcast %c20_i32 : i32 to vector<32x1xi32>
    %10 = arith.cmpi slt, %8, %9 : vector<32x1xi32>
    %c0 = arith.constant 0 : index
    %c0_1 = arith.constant 0 : index
    %11 = vector.load %arg2[%c0, %c0_1] : memref<32x128xf32, #tpu.memory_space<vmem>>, vector<32x128xf32>
    %c0_2 = arith.constant 0 : index
    %c0_3 = arith.constant 0 : index
    %12 = vector.load %arg3[%c0_2, %c0_3] : memref<32x128xf32, #tpu.memory_space<vmem>>, vector<32x128xf32>
    %13 = arith.subf %11, %12 : vector<32x128xf32>
    %14 = arith.mulf %13, %13 : vector<32x128xf32>
    %c0_4 = arith.constant 0 : index
    %c0_5 = arith.constant 0 : index
    %15 = vector.load %arg4[%c0_4, %c0_5] : memref<32x128xf32, #tpu.memory_space<vmem>>, vector<32x128xf32>
    %16 = arith.mulf %14, %15 : vector<32x128xf32>
    %cst = arith.constant 0.000000e+00 : f32
    %17 = vector.shape_cast %10 : vector<32x1xi1> to vector<32x1xi1>
    %18 = vector.broadcast %17 : vector<32x1xi1> to vector<32x128xi1>
    %19 = vector.broadcast %cst : f32 to vector<32x128xf32>
    %20 = arith.select %18, %16, %19 : vector<32x128xi1>, vector<32x128xf32>
    %c0_6 = arith.constant 0 : index
    %c0_7 = arith.constant 0 : index
    %21 = vector.load %arg5[%c0_6, %c0_7] : memref<32x128xf32, #tpu.memory_space<vmem>>, vector<32x128xf32>
    %22 = vector.shape_cast %20 : vector<32x128xf32> to vector<1x32x128xf32>
    %cst_8 = arith.constant dense<0.000000e+00> : vector<32x128xf32>
    %23 = vector.multi_reduction <add>, %22, %cst_8 [0] : vector<1x32x128xf32> to vector<32x128xf32>
    %24 = arith.addf %21, %23 : vector<32x128xf32>
    %c0_9 = arith.constant 0 : index
    %c0_10 = arith.constant 0 : index
    %25 = vector.load %arg5[%c0_9, %c0_10] : memref<32x128xf32, #tpu.memory_space<vmem>>, vector<32x128xf32>
    tpu.vector_store %arg5[%c0_9, %c0_10], %24 {strides = array<i32>} : memref<32x128xf32, #tpu.memory_space<vmem>>, vector<32x128xf32>,
    return
  }
  func.func @transform_0(%arg0: i32, %arg1: i32) -> (i32, i32) {
    %c1_i32 = arith.constant 1 : i32
    %0 = arith.muli %arg0, %c1_i32 : i32
    %1 = arith.addi %0, %arg1 : i32
    %c0_i32 = arith.constant 0 : i32
    %2 = arith.minsi %1, %c0_i32 : i32
    %c0_i32_0 = arith.constant 0 : i32
    %c0_i32_1 = arith.constant 0 : i32
    return %2, %c0_i32_0 : i32, i32
  }
  func.func @transform_1(%arg0: i32, %arg1: i32) -> (i32, i32) {
    %c1_i32 = arith.constant 1 : i32
    %0 = arith.muli %arg0, %c1_i32 : i32
    %1 = arith.addi %0, %arg1 : i32
    %c0_i32 = arith.constant 0 : i32
    %2 = arith.minsi %1, %c0_i32 : i32
    %c0_i32_0 = arith.constant 0 : i32
    %c0_i32_1 = arith.constant 0 : i32
    return %2, %c0_i32_0 : i32, i32
  }
  func.func @transform_2(%arg0: i32, %arg1: i32) -> (i32, i32) {
    %c1_i32 = arith.constant 1 : i32
    %0 = arith.muli %arg0, %c1_i32 : i32
    %1 = arith.addi %0, %arg1 : i32
    %c0_i32 = arith.constant 0 : i32
    %2 = arith.minsi %1, %c0_i32 : i32
    %c0_i32_0 = arith.constant 0 : i32
    %c0_i32_1 = arith.constant 0 : i32
    return %2, %c0_i32_0 : i32, i32
  }
  func.func @transform_3(%arg0: i32, %arg1: i32) -> (i32, i32) {
    %c0_i32 = arith.constant 0 : i32
    %c0_i32_0 = arith.constant 0 : i32
    return %arg0, %c0_i32 : i32, i32
  }
}

</mosaic_0001>

<llo_original>
// kernel: _forward_impl.3
$region0: #{_forward_impl.3}
  #allocation0 [shape = 'u32[]', space=smem, size = 0x4, offset = 0x4, fixed_abs, tag = 'smem constant byte address 0x4 - core index']
  #allocation1 [shape = 'u32[72,128]{1,0:T(1,128)}', space=vmem, size = 0x9000, scoped, tag = 'internal scratch']
  %s0 = inlined_call_operand.vmem [shape: f32[32,128], index: 0, kind: input, shape index: {}]
  %s1 = inlined_call_operand.vmem [shape: f32[32,128], index: 1, kind: input, shape index: {}]
  %s2 = inlined_call_operand.vmem [shape: f32[32,128], index: 2, kind: input, shape index: {}]
  %s3 = inlined_call_operand.vmem [shape: f32[32,128], index: 3, kind: output, shape index: {0}]
  %s4 = inlined_call_operand.vmem [shape: f32[32,128], index: 4, kind: output, shape index: {1}]
  %5 = xla_tuple %s3, %s4
  %s6 = sld [smem:[#allocation0]]
  $region34: #{_forward_impl.3} parent=0
    _
  %s8 = ssub.s32 1, %s6
  %s9 = scalar_select 0, %s8, %s6
  // Predicated region
  $region2: #{_forward_impl.3} parent=0 // pred_check
    _
  $region3: #{_forward_impl.3} parent=0 // pred_check_branch
    %11 = sbr.rel (0) target = $region5
  $region4: #{_forward_impl.3} parent=0 // pred_region
    %s12 = sadd.s32 0, 0
    %p13 = scmp.lt.s32.totalorder %s12, 0
    %s14 = scalar_select %p13, %s12, 0
    %s15 = smul.u32 4, %s14
    %p16 = scmp.lt.s32.totalorder %s15, 3
    %s17 = scalar_select %p16, %s15, 3
    %s18 = smul.addr %s17, 8
    %s19 = scalar_lea.vmem %s0, %s18
    %s20 = sadd.s32 0, 0
    %p21 = scmp.lt.s32.totalorder %s20, 0
    %s22 = scalar_select %p21, %s20, 0
    %s23 = smul.u32 4, %s22
  $region5: #{_forward_impl.3} parent=0 // pred_fallthru
    _
  // Predicated region
  $region6: #{_forward_impl.3} parent=0 // pred_check
    _
  $region7: #{_forward_impl.3} parent=0 // pred_check_branch
    %25 = sbr.rel (0) target = $region9
  $region8: #{_forward_impl.3} parent=0 // pred_region
    %s26 = sadd.s32 0, 0
    %p27 = scmp.lt.s32.totalorder %s26, 0
    %s28 = scalar_select %p27, %s26, 0
    %s29 = smul.u32 4, %s28
    %p30 = scmp.lt.s32.totalorder %s29, 3
    %s31 = scalar_select %p30, %s29, 3
    %s32 = smul.addr %s31, 8
    %s33 = scalar_lea.vmem %s1, %s32
    %s34 = sadd.s32 0, 0
    %p35 = scmp.lt.s32.totalorder %s34, 0
    %s36 = scalar_select %p35, %s34, 0
    %s37 = smul.u32 4, %s36
  $region9: #{_forward_impl.3} parent=0 // pred_fallthru
    _
  // Predicated region
  $region10: #{_forward_impl.3} parent=0 // pred_check
    _
  $region11: #{_forward_impl.3} parent=0 // pred_check_branch
    %39 = sbr.rel (0) target = $region13
  $region12: #{_forward_impl.3} parent=0 // pred_region
    %s40 = sadd.s32 0, 0
    %p41 = scmp.lt.s32.totalorder %s40, 0
    %s42 = scalar_select %p41, %s40, 0
    %s43 = smul.u32 4, %s42
    %p44 = scmp.lt.s32.totalorder %s43, 3
    %s45 = scalar_select %p44, %s43, 3
    %s46 = smul.addr %s45, 8
    %s47 = scalar_lea.vmem %s2, %s46
    %s48 = sadd.s32 0, 0
    %p49 = scmp.lt.s32.totalorder %s48, 0
    %s50 = scalar_select %p49, %s48, 0
    %s51 = smul.u32 4, %s50
  $region13: #{_forward_impl.3} parent=0 // pred_fallthru
    _
  %s52 = sadd.s32 0, 0
  %p53 = scmp.lt.s32.totalorder %s52, 0
  %s54 = scalar_select %p53, %s52, 0
  %s55 = smul.u32 4, %s54
  %p56 = scmp.lt.s32.totalorder %s55, 3
  %s57 = scalar_select %p56, %s55, 3
  %s58 = smul.addr %s57, 8
  %s59 = scalar_lea.vmem %s0, %s58
  %s60 = sadd.s32 0, 0
  %p61 = scmp.lt.s32.totalorder %s60, 0
  %s62 = scalar_select %p61, %s60, 0
  %s63 = smul.u32 4, %s62
  %p64 = scmp.lt.s32.totalorder %s63, 3
  %s65 = scalar_select %p64, %s63, 3
  %s66 = smul.addr %s65, 8
  %s67 = scalar_lea.vmem %s1, %s66
  %s68 = sadd.s32 0, 0
  %p69 = scmp.lt.s32.totalorder %s68, 0
  %s70 = scalar_select %p69, %s68, 0
  %s71 = smul.u32 4, %s70
  %p72 = scmp.lt.s32.totalorder %s71, 3
  %s73 = scalar_select %p72, %s71, 3
  %s74 = smul.addr %s73, 8
  %s75 = scalar_lea.vmem %s2, %s74
  %s76 = sadd.s32 0, 0
  %p77 = scmp.lt.s32.totalorder %s76, 0
  %s78 = scalar_select %p77, %s76, 0
  %s79 = smul.u32 4, %s78
  %p80 = scmp.lt.s32.totalorder %s79, 3
  %s81 = scalar_select %p80, %s79, 3
  %s82 = smul.addr %s81, 8
  %s83 = scalar_lea.vmem %s0, %s82
  %s84 = sadd.s32 0, 0
  %p85 = scmp.lt.s32.totalorder %s84, 0
  %s86 = scalar_select %p85, %s84, 0
  %s87 = smul.u32 4, %s86
  %s88 = sadd.s32 0, 0
  %p89 = scmp.lt.s32.totalorder %s88, 0
  %s90 = scalar_select %p89, %s88, 0
  %s91 = smul.u32 4, %s90
  %p92 = scmp.lt.s32.totalorder %s91, 3
  %s93 = scalar_select %p92, %s91, 3
  %s94 = smul.addr %s93, 8
  %s95 = scalar_lea.vmem %s1, %s94
  %s96 = sadd.s32 0, 0
  %p97 = scmp.lt.s32.totalorder %s96, 0
  %s98 = scalar_select %p97, %s96, 0
  %s99 = smul.u32 4, %s98
  %s100 = sadd.s32 0, 0
  %p101 = scmp.lt.s32.totalorder %s100, 0
  %s102 = scalar_select %p101, %s100, 0
  %s103 = smul.u32 4, %s102
  %p104 = scmp.lt.s32.totalorder %s103, 3
  %s105 = scalar_select %p104, %s103, 3
  %s106 = smul.addr %s105, 8
  %s107 = scalar_lea.vmem %s2, %s106
  %s108 = sadd.s32 0, 0
  %p109 = scmp.lt.s32.totalorder %s108, 0
  %s110 = scalar_select %p109, %s108, 0
  %s111 = smul.u32 4, %s110
  %p112 = scmp.eq.s32.totalorder 0, 0
  // Predicated region
  $region14: #{_forward_impl.3} parent=0 // pred_check
    %p113 = pneg %p112
  $region15: #{_forward_impl.3} parent=0 // pred_check_branch
    %115 = sbr.rel (%p113) target = $region17
  $region16: #{_forward_impl.3} parent=0 // pred_region
    %116 = vst [vmem:[%s3] sm:$0xff] 0.0
    %117 = vst [vmem:[%s3 + $0x8] sm:$0xff] 0.0
    %118 = vst [vmem:[%s3 + $0x10] sm:$0xff] 0.0
    %119 = vst [vmem:[%s3 + $0x18] sm:$0xff] 0.0
    %120 = vst [vmem:[%s4] sm:$0xff] 0.0
    %121 = vst [vmem:[%s4 + $0x8] sm:$0xff] 0.0
    %122 = vst [vmem:[%s4 + $0x10] sm:$0xff] 0.0
    %123 = vst [vmem:[%s4 + $0x18] sm:$0xff] 0.0
  $region17: #{_forward_impl.3} parent=0 // pred_fallthru
    _
  %s124 = sadd.s32 0, 0
  %s125 = smul.u32 %s124, 32
  %v126 = vlaneseq
  %v127 = vshrl.u32 %v126, 7
  %v128 = vadd.s32 %v127, 8
  %v129 = vadd.s32 %v127, 16
  %v130 = vadd.s32 %v127, 24
  %v131 = vstv %s125
  %v132 = vadd.s32 %v131, %v127
  %v133 = vadd.s32 %v131, %v128
  %v134 = vadd.s32 %v131, %v129
  %v135 = vadd.s32 %v131, %v130
  %vm136 = vcmp.lt.s32.totalorder %v132, 32
  %vm137 = vcmp.lt.s32.totalorder %v133, 32
  %vm138 = vcmp.lt.s32.totalorder %v134, 32
  %vm139 = vcmp.lt.s32.totalorder %v135, 32
  %v140 = vld [vmem:[%s83] sm:$0xff]
  %v141 = vld [vmem:[%s83 + $0x8] sm:$0xff]
  %v142 = vld [vmem:[%s83 + $0x10] sm:$0xff]
  %v143 = vld [vmem:[%s83 + $0x18] sm:$0xff]
  %v144 = vld [vmem:[%s95] sm:$0xff]
  %v145 = vld [vmem:[%s95 + $0x8] sm:$0xff]
  %v146 = vld [vmem:[%s95 + $0x10] sm:$0xff]
  %v147 = vld [vmem:[%s95 + $0x18] sm:$0xff]
  %v148 = vsub.f32 %v140, %v144
  %v149 = vsub.f32 %v141, %v145
  %v150 = vsub.f32 %v142, %v146
  %v151 = vsub.f32 %v143, %v147
  %v152 = vand.u32 2147483647, %v148
  %v153 = vand.u32 2147483647, %v149
  %v154 = vand.u32 2147483647, %v150
  %v155 = vand.u32 2147483647, %v151
  %vm156 = vcmp.lt.f32.partialorder %v152, 0.11111111
  %vm157 = vcmp.lt.f32.partialorder %v153, 0.11111111
  %vm158 = vcmp.lt.f32.partialorder %v154, 0.11111111
  %vm159 = vcmp.lt.f32.partialorder %v155, 0.11111111
  %v160 = vmul.f32 %v152, 4.5
  %v161 = vmul.f32 %v153, 4.5
  %v162 = vmul.f32 %v154, 4.5
  %v163 = vmul.f32 %v155, 4.5
  %v164 = vmul.f32 %v160, %v152
  %v165 = vmul.f32 %v161, %v153
  %v166 = vmul.f32 %v162, %v154
  %v167 = vmul.f32 %v163, %v155
  %v168 = vsub.f32 %v152, 0.055555556
  %v169 = vsub.f32 %v153, 0.055555556
  %v170 = vsub.f32 %v154, 0.055555556
  %v171 = vsub.f32 %v155, 0.055555556
  %v172 = vsel %vm156, %v164, %v168
  %v173 = vsel %vm157, %v165, %v169
  %v174 = vsel %vm158, %v166, %v170
  %v175 = vsel %vm159, %v167, %v171
  %v176 = vld [vmem:[%s107] sm:$0xff]
  %v177 = vld [vmem:[%s107 + $0x8] sm:$0xff]
  %v178 = vld [vmem:[%s107 + $0x10] sm:$0xff]
  %v179 = vld [vmem:[%s107 + $0x18] sm:$0xff]
  %v180 = vmul.f32 %v172, %v176
  %v181 = vmul.f32 %v173, %v177
  %v182 = vmul.f32 %v174, %v178
  %v183 = vmul.f32 %v175, %v179
  %v184 = vsel %vm136, 1, 0
  %v185 = vsel %vm137, 1, 0
  %v186 = vsel %vm138, 1, 0
  %v187 = vsel %vm139, 1, 0
  %vm188 = vcmp.eq.s32.totalorder %v184, 1
  %vm189 = vcmp.eq.s32.totalorder %v185, 1
  %vm190 = vcmp.eq.s32.totalorder %v186, 1
  %vm191 = vcmp.eq.s32.totalorder %v187, 1
  %v192 = vsel %vm188, %v180, 0.0
  %v193 = vsel %vm189, %v181, 0.0
  %v194 = vsel %vm190, %v182, 0.0
  %v195 = vsel %vm191, %v183, 0.0
  %vm196 = vcmp.gt.f32.partialorder %v176, 0.0
  %vm197 = vcmp.gt.f32.partialorder %v177, 0.0
  %vm198 = vcmp.gt.f32.partialorder %v178, 0.0
  %vm199 = vcmp.gt.f32.partialorder %v179, 0.0
  %vm200 = vmand %vm188, %vm196
  %vm201 = vmand %vm189, %vm197
  %vm202 = vmand %vm190, %vm198
  %vm203 = vmand %vm191, %vm199
  %v204 = vsel %vm200, 1.0, 0.0
  %v205 = vsel %vm201, 1.0, 0.0
  %v206 = vsel %vm202, 1.0, 0.0
  %v207 = vsel %vm203, 1.0, 0.0
  %v208 = vld [vmem:[%s3] sm:$0xff]
  %v209 = vld [vmem:[%s3 + $0x8] sm:$0xff]
  %v210 = vld [vmem:[%s3 + $0x10] sm:$0xff]
  %v211 = vld [vmem:[%s3 + $0x18] sm:$0xff]
  %v212 = vadd.f32 %v192, 0.0
  %v213 = vadd.f32 %v193, 0.0
  %v214 = vadd.f32 %v194, 0.0
  %v215 = vadd.f32 %v195, 0.0
  %v216 = vadd.f32 %v208, %v212
  %v217 = vadd.f32 %v209, %v213
  %v218 = vadd.f32 %v210, %v214
  %v219 = vadd.f32 %v211, %v215
  %220 = vst [vmem:[%s3] sm:$0xff] %v216
  %221 = vst [vmem:[%s3 + $0x8] sm:$0xff] %v217
  %222 = vst [vmem:[%s3 + $0x10] sm:$0xff] %v218
  %223 = vst [vmem:[%s3 + $0x18] sm:$0xff] %v219
  %v224 = vld [vmem:[%s4] sm:$0xff]
  %v225 = vld [vmem:[%s4 + $0x8] sm:$0xff]
  %v226 = vld [vmem:[%s4 + $0x10] sm:$0xff]
  %v227 = vld [vmem:[%s4 + $0x18] sm:$0xff]
  %v228 = vadd.f32 %v204, 0.0
  %v229 = vadd.f32 %v205, 0.0
  %v230 = vadd.f32 %v206, 0.0
  %v231 = vadd.f32 %v207, 0.0
  %v232 = vadd.f32 %v224, %v228
  %v233 = vadd.f32 %v225, %v229
  %v234 = vadd.f32 %v226, %v230
  %v235 = vadd.f32 %v227, %v231
  %236 = vst [vmem:[%s4] sm:$0xff] %v232
  %237 = vst [vmem:[%s4 + $0x8] sm:$0xff] %v233
  %238 = vst [vmem:[%s4 + $0x10] sm:$0xff] %v234
  %239 = vst [vmem:[%s4 + $0x18] sm:$0xff] %v235
  // Predicated region
  $region18: #{_forward_impl.3} parent=0 // pred_check
    _
  $region19: #{_forward_impl.3} parent=0 // pred_check_branch
    %241 = sbr.rel (0) target = $region21
  $region20: #{_forward_impl.3} parent=0 // pred_region
    _
  $region21: #{_forward_impl.3} parent=0 // pred_fallthru
    _
  // Predicated region
  $region22: #{_forward_impl.3} parent=0 // pred_check
    _
  $region23: #{_forward_impl.3} parent=0 // pred_check_branch
    %243 = sbr.rel (0) target = $region25
  $region24: #{_forward_impl.3} parent=0 // pred_region
    _
  $region25: #{_forward_impl.3} parent=0 // pred_fallthru
    _
  // Predicated region
  $region26: #{_forward_impl.3} parent=0 // pred_check
    _
  $region27: #{_forward_impl.3} parent=0 // pred_check_branch
    %245 = sbr.rel (0) target = $region29
  $region28: #{_forward_impl.3} parent=0 // pred_region
    _
  $region29: #{_forward_impl.3} parent=0 // pred_fallthru
    _
  // Predicated region
  $region30: #{_forward_impl.3} parent=0 // pred_check
    _
  $region31: #{_forward_impl.3} parent=0 // pred_check_branch
    %247 = sbr.rel (0) target = $region33
  $region32: #{_forward_impl.3} parent=0 // pred_region
    _
  $region33: #{_forward_impl.3} parent=0 // pred_fallthru
    _

// kernel: _forward_impl.2
$region0: #{_forward_impl.2}
  #allocation0 [shape = 'u32[]', space=smem, size = 0x4, offset = 0x4, fixed_abs, tag = 'smem constant byte address 0x4 - core index']
  #allocation1 [shape = 'u32[72,128]{1,0:T(1,128)}', space=vmem, size = 0x9000, scoped, tag = 'internal scratch']
  %s0 = inlined_call_operand.vmem [shape: f32[20,128], index: 0, kind: input, shape index: {}]
  %s1 = inlined_call_operand.vmem [shape: f32[20,128], index: 1, kind: input, shape index: {}]
  %s2 = inlined_call_operand.vmem [shape: f32[20,128], index: 2, kind: input, shape index: {}]
  %s3 = inlined_call_operand.vmem [shape: f32[32,128], index: 3, kind: output, shape index: {}]
  %s4 = sld [smem:[#allocation0]]
  $region26: #{_forward_impl.2} parent=0
    _
  %s6 = ssub.s32 1, %s4
  %s7 = scalar_select 0, %s6, %s4
  // Predicated region
  $region2: #{_forward_impl.2} parent=0 // pred_check
    _
  $region3: #{_forward_impl.2} parent=0 // pred_check_branch
    %9 = sbr.rel (0) target = $region5
  $region4: #{_forward_impl.2} parent=0 // pred_region
    %s10 = sadd.s32 0, 0
    %p11 = scmp.lt.s32.totalorder %s10, 0
    %s12 = scalar_select %p11, %s10, 0
    %s13 = smul.u32 4, %s12
    %s14 = ssub.s32 3, %s13
    %s15 = smul.u32 8, %s14
    %p16 = scmp.lt.s32.totalorder %s13, 2
    %s17 = scalar_select %p16, %s13, 2
    %s18 = smul.addr %s17, 8
    %s19 = scalar_lea.vmem %s0, %s18
    %s20 = sadd.s32 0, 0
    %p21 = scmp.lt.s32.totalorder %s20, 0
    %s22 = scalar_select %p21, %s20, 0
    %s23 = smul.u32 4, %s22
    %s24 = ssub.s32 3, %s23
    %s25 = smul.u32 8, %s24
  $region5: #{_forward_impl.2} parent=0 // pred_fallthru
    _
  // Predicated region
  $region6: #{_forward_impl.2} parent=0 // pred_check
    _
  $region7: #{_forward_impl.2} parent=0 // pred_check_branch
    %27 = sbr.rel (0) target = $region9
  $region8: #{_forward_impl.2} parent=0 // pred_region
    %s28 = sadd.s32 0, 0
    %p29 = scmp.lt.s32.totalorder %s28, 0
    %s30 = scalar_select %p29, %s28, 0
    %s31 = smul.u32 4, %s30
    %s32 = ssub.s32 3, %s31
    %s33 = smul.u32 8, %s32
    %p34 = scmp.lt.s32.totalorder %s31, 2
    %s35 = scalar_select %p34, %s31, 2
    %s36 = smul.addr %s35, 8
    %s37 = scalar_lea.vmem %s1, %s36
    %s38 = sadd.s32 0, 0
    %p39 = scmp.lt.s32.totalorder %s38, 0
    %s40 = scalar_select %p39, %s38, 0
    %s41 = smul.u32 4, %s40
    %s42 = ssub.s32 3, %s41
    %s43 = smul.u32 8, %s42
  $region9: #{_forward_impl.2} parent=0 // pred_fallthru
    _
  // Predicated region
  $region10: #{_forward_impl.2} parent=0 // pred_check
    _
  $region11: #{_forward_impl.2} parent=0 // pred_check_branch
    %45 = sbr.rel (0) target = $region13
  $region12: #{_forward_impl.2} parent=0 // pred_region
    %s46 = sadd.s32 0, 0
    %p47 = scmp.lt.s32.totalorder %s46, 0
    %s48 = scalar_select %p47, %s46, 0
    %s49 = smul.u32 4, %s48
    %s50 = ssub.s32 3, %s49
    %s51 = smul.u32 8, %s50
    %p52 = scmp.lt.s32.totalorder %s49, 2
    %s53 = scalar_select %p52, %s49, 2
    %s54 = smul.addr %s53, 8
    %s55 = scalar_lea.vmem %s2, %s54
    %s56 = sadd.s32 0, 0
    %p57 = scmp.lt.s32.totalorder %s56, 0
    %s58 = scalar_select %p57, %s56, 0
    %s59 = smul.u32 4, %s58
    %s60 = ssub.s32 3, %s59
    %s61 = smul.u32 8, %s60
  $region13: #{_forward_impl.2} parent=0 // pred_fallthru
    _
  %s62 = sadd.s32 0, 0
  %p63 = scmp.lt.s32.totalorder %s62, 0
  %s64 = scalar_select %p63, %s62, 0
  %s65 = smul.u32 4, %s64
  %s66 = ssub.s32 3, %s65
  %s67 = smul.u32 8, %s66
  %p68 = scmp.lt.s32.totalorder %s65, 2
  %s69 = scalar_select %p68, %s65, 2
  %s70 = smul.addr %s69, 8
  %s71 = scalar_lea.vmem %s0, %s70
  %s72 = sadd.s32 0, 0
  %p73 = scmp.lt.s32.totalorder %s72, 0
  %s74 = scalar_select %p73, %s72, 0
  %s75 = smul.u32 4, %s74
  %s76 = ssub.s32 3, %s75
  %s77 = smul.u32 8, %s76
  %p78 = scmp.lt.s32.totalorder %s75, 2
  %s79 = scalar_select %p78, %s75, 2
  %s80 = smul.addr %s79, 8
  %s81 = scalar_lea.vmem %s1, %s80
  %s82 = sadd.s32 0, 0
  %p83 = scmp.lt.s32.totalorder %s82, 0
  %s84 = scalar_select %p83, %s82, 0
  %s85 = smul.u32 4, %s84
  %s86 = ssub.s32 3, %s85
  %s87 = smul.u32 8, %s86
  %p88 = scmp.lt.s32.totalorder %s85, 2
  %s89 = scalar_select %p88, %s85, 2
  %s90 = smul.addr %s89, 8
  %s91 = scalar_lea.vmem %s2, %s90
  %s92 = sadd.s32 0, 0
  %p93 = scmp.lt.s32.totalorder %s92, 0
  %s94 = scalar_select %p93, %s92, 0
  %s95 = smul.u32 4, %s94
  %s96 = ssub.s32 3, %s95
  %s97 = smul.u32 8, %s96
  %p98 = scmp.lt.s32.totalorder %s95, 2
  %s99 = scalar_select %p98, %s95, 2
  %s100 = smul.addr %s99, 8
  %s101 = scalar_lea.vmem %s0, %s100
  %s102 = sadd.s32 0, 0
  %p103 = scmp.lt.s32.totalorder %s102, 0
  %s104 = scalar_select %p103, %s102, 0
  %s105 = smul.u32 4, %s104
  %s106 = ssub.s32 3, %s105
  %s107 = smul.u32 8, %s106
  %s108 = sadd.s32 0, 0
  %p109 = scmp.lt.s32.totalorder %s108, 0
  %s110 = scalar_select %p109, %s108, 0
  %s111 = smul.u32 4, %s110
  %s112 = ssub.s32 3, %s111
  %s113 = smul.u32 8, %s112
  %p114 = scmp.lt.s32.totalorder %s111, 2
  %s115 = scalar_select %p114, %s111, 2
  %s116 = smul.addr %s115, 8
  %s117 = scalar_lea.vmem %s1, %s116
  %s118 = sadd.s32 0, 0
  %p119 = scmp.lt.s32.totalorder %s118, 0
  %s120 = scalar_select %p119, %s118, 0
  %s121 = smul.u32 4, %s120
  %s122 = ssub.s32 3, %s121
  %s123 = smul.u32 8, %s122
  %s124 = sadd.s32 0, 0
  %p125 = scmp.lt.s32.totalorder %s124, 0
  %s126 = scalar_select %p125, %s124, 0
  %s127 = smul.u32 4, %s126
  %s128 = ssub.s32 3, %s127
  %s129 = smul.u32 8, %s128
  %p130 = scmp.lt.s32.totalorder %s127, 2
  %s131 = scalar_select %p130, %s127, 2
  %s132 = smul.addr %s131, 8
  %s133 = scalar_lea.vmem %s2, %s132
  %s134 = sadd.s32 0, 0
  %p135 = scmp.lt.s32.totalorder %s134, 0
  %s136 = scalar_select %p135, %s134, 0
  %s137 = smul.u32 4, %s136
  %s138 = ssub.s32 3, %s137
  %s139 = smul.u32 8, %s138
  %p140 = scmp.eq.s32.totalorder 0, 0
  // Predicated region
  $region14: #{_forward_impl.2} parent=0 // pred_check
    %p141 = pneg %p140
  $region15: #{_forward_impl.2} parent=0 // pred_check_branch
    %143 = sbr.rel (%p141) target = $region17
  $region16: #{_forward_impl.2} parent=0 // pred_region
    %144 = vst [vmem:[%s3] sm:$0xff] 0.0
    %145 = vst [vmem:[%s3 + $0x8] sm:$0xff] 0.0
    %146 = vst [vmem:[%s3 + $0x10] sm:$0xff] 0.0
    %147 = vst [vmem:[%s3 + $0x18] sm:$0xff] 0.0
  $region17: #{_forward_impl.2} parent=0 // pred_fallthru
    _
  %s148 = sadd.s32 0, 0
  %s149 = smul.u32 %s148, 32
  %v150 = vlaneseq
  %v151 = vshrl.u32 %v150, 7
  %v152 = vadd.s32 %v151, 8
  %v153 = vadd.s32 %v151, 16
  %v154 = vadd.s32 %v151, 24
  %v155 = vstv %s149
  %v156 = vadd.s32 %v155, %v151
  %v157 = vadd.s32 %v155, %v152
  %v158 = vadd.s32 %v155, %v153
  %v159 = vadd.s32 %v155, %v154
  %vm160 = vcmp.lt.s32.totalorder %v156, 20
  %vm161 = vcmp.lt.s32.totalorder %v157, 20
  %vm162 = vcmp.lt.s32.totalorder %v158, 20
  %vm163 = vcmp.lt.s32.totalorder %v159, 20
  %v164 = vld [vmem:[%s101] sm:$0xff]
  %v165 = vld [vmem:[%s101 + $0x8] sm:$0xff]
  %v166 = vld [vmem:[%s101 + $0x10] sm:$0xff]
  %v167 = vld [vmem:[%s101 + $0x18] sm:$0xff]
  %v168 = vld [vmem:[%s117] sm:$0xff]
  %v169 = vld [vmem:[%s117 + $0x8] sm:$0xff]
  %v170 = vld [vmem:[%s117 + $0x10] sm:$0xff]
  %v171 = vld [vmem:[%s117 + $0x18] sm:$0xff]
  %v172 = vsub.f32 %v164, %v168
  %v173 = vsub.f32 %v165, %v169
  %v174 = vsub.f32 %v166, %v170
  %v175 = vsub.f32 %v167, %v171
  %v176 = vmul.f32 %v172, %v172
  %v177 = vmul.f32 %v173, %v173
  %v178 = vmul.f32 %v174, %v174
  %v179 = vmul.f32 %v175, %v175
  %v180 = vld [vmem:[%s133] sm:$0xff]
  %v181 = vld [vmem:[%s133 + $0x8] sm:$0xff]
  %v182 = vld [vmem:[%s133 + $0x10] sm:$0xff]
  %v183 = vld [vmem:[%s133 + $0x18] sm:$0xff]
  %v184 = vmul.f32 %v176, %v180
  %v185 = vmul.f32 %v177, %v181
  %v186 = vmul.f32 %v178, %v182
  %v187 = vmul.f32 %v179, %v183
  %v188 = vsel %vm160, 1, 0
  %v189 = vsel %vm161, 1, 0
  %v190 = vsel %vm162, 1, 0
  %v191 = vsel %vm163, 1, 0
  %vm192 = vcmp.eq.s32.totalorder %v188, 1
  %vm193 = vcmp.eq.s32.totalorder %v189, 1
  %vm194 = vcmp.eq.s32.totalorder %v190, 1
  %vm195 = vcmp.eq.s32.totalorder %v191, 1
  %v196 = vsel %vm192, %v184, 0.0
  %v197 = vsel %vm193, %v185, 0.0
  %v198 = vsel %vm194, %v186, 0.0
  %v199 = vsel %vm195, %v187, 0.0
  %v200 = vld [vmem:[%s3] sm:$0xff]
  %v201 = vld [vmem:[%s3 + $0x8] sm:$0xff]
  %v202 = vld [vmem:[%s3 + $0x10] sm:$0xff]
  %v203 = vld [vmem:[%s3 + $0x18] sm:$0xff]
  %v204 = vadd.f32 %v196, 0.0
  %v205 = vadd.f32 %v197, 0.0
  %v206 = vadd.f32 %v198, 0.0
  %v207 = vadd.f32 %v199, 0.0
  %v208 = vadd.f32 %v200, %v204
  %v209 = vadd.f32 %v201, %v205
  %v210 = vadd.f32 %v202, %v206
  %v211 = vadd.f32 %v203, %v207
  %212 = vst [vmem:[%s3] sm:$0xff] %v208
  %213 = vst [vmem:[%s3 + $0x8] sm:$0xff] %v209
  %214 = vst [vmem:[%s3 + $0x10] sm:$0xff] %v210
  %215 = vst [vmem:[%s3 + $0x18] sm:$0xff] %v211
  // Predicated region
  $region18: #{_forward_impl.2} parent=0 // pred_check
    _
  $region19: #{_forward_impl.2} parent=0 // pred_check_branch
    %217 = sbr.rel (0) target = $region21
  $region20: #{_forward_impl.2} parent=0 // pred_region
    _
  $region21: #{_forward_impl.2} parent=0 // pred_fallthru
    _
  // Predicated region
  $region22: #{_forward_impl.2} parent=0 // pred_check
    _
  $region23: #{_forward_impl.2} parent=0 // pred_check_branch
    %219 = sbr.rel (0) target = $region25
  $region24: #{_forward_impl.2} parent=0 // pred_region
    _
  $region25: #{_forward_impl.2} parent=0 // pred_fallthru
    _

</llo_original>
